<compile_context>
chip_gen: v7x
topology: tpu7x:2x2x1
jax: 0.10.0
libtpu: 0.0.40
codegen_flags: <defaults>
</compile_context>

<pallas_src>
import jax
import jax.numpy as jnp
from jax.experimental import pallas as pl
from jax.experimental.pallas import tpu as pltpu


_LANE = 512        # lane-dense last dim (multiple of 128)
_TILE_ROWS = 1024  # rows per grid step (multiple of 8); 1024*512*4B = 2 MiB/tile


def _ff_attention_kernel(w_ref, text_ref, image_ref, out_ref):
    # w_ref: (2,) float32 in SMEM -> [weight_image, weight_text]
    w_img = w_ref[0]
    w_txt = w_ref[1]
    fused = (w_img * image_ref[...].astype(jnp.float32)
             + w_txt * text_ref[...].astype(jnp.float32))
    out_ref[...] = fused.astype(out_ref.dtype)


def ff_attention(text_features, image_features, weight_image=0.7, weight_text=0.3):
    """fused_feature = weight_image * image_features + weight_text * text_features."""
    assert text_features.shape == image_features.shape, "shape mismatch"
    orig_shape = text_features.shape
    out_dtype = jnp.result_type(text_features.dtype, image_features.dtype)

    n = 1
    for d in orig_shape:
        n *= d

    # Lane-dense layout: flatten everything, present as (rows, _LANE).
    rows_total = (n + _LANE - 1) // _LANE
    if rows_total <= _TILE_ROWS:
        # Single row-block equal to the full rows dim (always a legal block).
        tile_rows = rows_total
        rows_padded = rows_total
    else:
        tile_rows = _TILE_ROWS
        rows_padded = ((rows_total + _TILE_ROWS - 1) // _TILE_ROWS) * _TILE_ROWS
    total_padded = rows_padded * _LANE
    pad = total_padded - n

    def _prep(x):
        flat = x.reshape(-1)
        if pad:
            flat = jnp.pad(flat, (0, pad))
        return flat.reshape(rows_padded, _LANE)

    text2d = _prep(text_features)
    image2d = _prep(image_features)
    weights = jnp.array([weight_image, weight_text], dtype=jnp.float32)

    grid = (rows_padded // tile_rows,)

    out2d = pl.pallas_call(
        _ff_attention_kernel,
        out_shape=jax.ShapeDtypeStruct((rows_padded, _LANE), out_dtype),
        grid=grid,
        in_specs=[
            pl.BlockSpec(memory_space=pltpu.MemorySpace.SMEM),      # weights (2,)
            pl.BlockSpec((tile_rows, _LANE), lambda i: (i, 0)),     # text tile
            pl.BlockSpec((tile_rows, _LANE), lambda i: (i, 0)),     # image tile
        ],
        out_specs=pl.BlockSpec((tile_rows, _LANE), lambda i: (i, 0)),
        compiler_params=pltpu.CompilerParams(
            dimension_semantics=("parallel",),     # independent tiles -> megacore OK
            vmem_limit_bytes=48 * 1024 * 1024,     # safe on v7x (64 MiB), ample on v5e/v6e
        ),
    )(weights, text2d, image2d)

    out_flat = out2d.reshape(-1)
    if pad:
        out_flat = out_flat[:n]
    return out_flat.reshape(orig_shape)


if __name__ == "__main__":
    key = jax.random.PRNGKey(0)

    # --- primary check: small shape matching the module's typical use ---
    batch, seq, hidden = 2, 8, 32
    k_text, k_image, key = (*jax.random.split(key, 2), key)
    text_features = jax.random.normal(k_text, (batch, seq, hidden), dtype=jnp.float32)
    image_features = jax.random.normal(k_image, (batch, seq, hidden), dtype=jnp.float32)

    fused = ff_attention(text_features, image_features, weight_image=0.7, weight_text=0.3)
    fused = jax.block_until_ready(fused)
    ref = 0.7 * image_features + 0.3 * text_features
    assert fused.shape == ref.shape
    assert jnp.allclose(fused, ref, atol=1e-6), "mismatch vs reference (small f32)"

    # --- secondary check: exercises the multi-tile pipelined path ---
    k1, k2, key = (*jax.random.split(key, 2), key)
    t_big = jax.random.normal(k1, (2, 2048, 512), dtype=jnp.float32)
    i_big = jax.random.normal(k2, (2, 2048, 512), dtype=jnp.float32)
    fused_big = jax.block_until_ready(ff_attention(t_big, i_big, 0.7, 0.3))
    ref_big = 0.7 * i_big + 0.3 * t_big
    assert jnp.allclose(fused_big, ref_big, atol=1e-5), "mismatch vs reference (tiled f32)"

    # --- tertiary check: non-divisible size + bf16 (exercises padding + astype) ---
    k3, k4, _ = (*jax.random.split(key, 2), key)
    t_bf = jax.random.normal(k3, (3, 40, 100), dtype=jnp.bfloat16)
    i_bf = jax.random.normal(k4, (3, 40, 100), dtype=jnp.bfloat16)
    fused_bf = jax.block_until_ready(ff_attention(t_bf, i_bf, 0.7, 0.3))
    ref_bf = (0.7 * i_bf.astype(jnp.float32) + 0.3 * t_bf.astype(jnp.float32)).astype(jnp.bfloat16)
    assert jnp.allclose(fused_bf.astype(jnp.float32), ref_bf.astype(jnp.float32),
                        atol=2e-2), "mismatch vs reference (bf16)"

    print("KERNEL_OK")
</pallas_src>

<mosaic_0001>
module attributes {stable_mosaic.version = 11 : i64} {
  func.func @_ff_attention_kernel(%arg0: i32, %arg1: memref<2xf32, #tpu.memory_space<smem>>, %arg2: memref<1x512xf32, #tpu.memory_space<vmem>>, %arg3: memref<1x512xf32, #tpu.memory_space<vmem>>, %arg4: memref<1x512xf32, #tpu.memory_space<vmem>>) attributes {dimension_semantics = [#tpu.dimension_semantics<parallel>], iteration_bounds = array<i64: 1>, scalar_prefetch = 0 : i64, scratch_operands = 0 : i64, tpu.core_type = #tpu.core_type<tc>, window_params = [{transform_indices = @transform_0, window_bounds = array<i64: 2>}, {transform_indices = @transform_1, window_bounds = array<i64: 1, 512>}, {transform_indices = @transform_2, window_bounds = array<i64: 1, 512>}, {transform_indices = @transform_3, window_bounds = array<i64: 1, 512>}]} {
    %c0 = arith.constant 0 : index
    %0 = memref.load %arg1[%c0] : memref<2xf32, #tpu.memory_space<smem>>
    %c1 = arith.constant 1 : index
    %1 = memref.load %arg1[%c1] : memref<2xf32, #tpu.memory_space<smem>>
    %c0_0 = arith.constant 0 : index
    %c0_1 = arith.constant 0 : index
    %2 = vector.load %arg3[%c0_0, %c0_1] : memref<1x512xf32, #tpu.memory_space<vmem>>, vector<1x512xf32>
    %3 = vector.broadcast %0 : f32 to vector<1x512xf32>
    %4 = arith.mulf %3, %2 : vector<1x512xf32>
    %c0_2 = arith.constant 0 : index
    %c0_3 = arith.constant 0 : index
    %5 = vector.load %arg2[%c0_2, %c0_3] : memref<1x512xf32, #tpu.memory_space<vmem>>, vector<1x512xf32>
    %6 = vector.broadcast %1 : f32 to vector<1x512xf32>
    %7 = arith.mulf %6, %5 : vector<1x512xf32>
    %8 = arith.addf %4, %7 : vector<1x512xf32>
    %c0_4 = arith.constant 0 : index
    %c0_5 = arith.constant 0 : index
    %9 = vector.load %arg4[%c0_4, %c0_5] : memref<1x512xf32, #tpu.memory_space<vmem>>, vector<1x512xf32>
    tpu.vector_store %arg4[%c0_4, %c0_5], %8 {strides = array<i32>} : memref<1x512xf32, #tpu.memory_space<vmem>>, vector<1x512xf32>,
    return
  }
  func.func @transform_0(%arg0: i32) -> i32 {
    %c0_i32 = arith.constant 0 : i32
    %c0_i32_0 = arith.constant 0 : i32
    return %c0_i32 : i32
  }
  func.func @transform_1(%arg0: i32) -> (i32, i32) {
    %c0_i32 = arith.constant 0 : i32
    %c0_i32_0 = arith.constant 0 : i32
    return %arg0, %c0_i32 : i32, i32
  }
  func.func @transform_2(%arg0: i32) -> (i32, i32) {
    %c0_i32 = arith.constant 0 : i32
    %c0_i32_0 = arith.constant 0 : i32
    return %arg0, %c0_i32 : i32, i32
  }
  func.func @transform_3(%arg0: i32) -> (i32, i32) {
    %c0_i32 = arith.constant 0 : i32
    %c0_i32_0 = arith.constant 0 : i32
    return %arg0, %c0_i32 : i32, i32
  }
}

</mosaic_0001>

<llo_original>
// kernel: tpu_custom_call.1
$region0: #{tpu_custom_call.1}
  #allocation0 [shape = 'u32[]', space=smem, size = 0x4, offset = 0x4, fixed_abs, tag = 'smem constant byte address 0x4 - core index']
  #allocation1 [shape = 'u32[144,128]{1,0:T(1,128)}', space=vmem, size = 0x12000, scoped, tag = 'internal scratch']
  %s0 = inlined_call_operand.hbm [shape: f32[2], index: 0, kind: input, shape index: {}]
  %s1 = inlined_call_operand.hbm [shape: f32[1,512], index: 1, kind: input, shape index: {}]
  %s2 = inlined_call_operand.vmem [shape: f32[1,512], index: 2, kind: input, shape index: {}]
  %s3 = inlined_call_operand.hbm [shape: f32[1,512], index: 3, kind: output, shape index: {}]
  %s4 = sld [smem:[#allocation0]]
  $region30: #{tpu_custom_call.1} parent=0
    _
  %s6 = ssub.s32 1, %s4
  %s7 = scalar_select 0, %s6, %s4
  $region1: #{tpu_custom_call.1} parent=0
    #allocation2 [shape = 'u8[512]{0}', space=smem, size = 0x200, scoped, tag = 'input window, operand 0, single buffered']
    #allocation3 [shape = 's32[1]{0}', space=sflag, size = 0x4, scoped, tag = 'scoped memory for tpu_custom_call.1']
    #allocation4 [shape = 's32[1]{0}', space=sflag, size = 0x4, scoped, tag = 'scoped memory for tpu_custom_call.1']
    #allocation5 [shape = 's32[1]{0}', space=sflag, size = 0x4, scoped, tag = 'scoped memory for tpu_custom_call.1']
    #allocation6 [shape = 'u8[2048]{0}', space=vmem, size = 0x800, scoped, tag = 'input window, operand 1, single buffered']
    #allocation7 [shape = 'u8[2048]{0}', space=vmem, size = 0x800, scoped, tag = 'output window, operand 0, single buffered']
    %8 = vsyncpa [#allocation5], 0
    %9 = vsyncpa [#allocation3], 0
    %10 = vsyncpa [#allocation4], 0
    // Predicated region
    $region2: #{tpu_custom_call.1} parent=1 // pred_check
      _
    $region3: #{tpu_custom_call.1} parent=1 // pred_check_branch
      %12 = sbr.rel (0) target = $region5
    $region4: #{tpu_custom_call.1} parent=1 // pred_region
      %s14 = ssub.s32 16, 16
      %15 = vsyncadd [#allocation5], %s14
      %18 = dma.hbm_to_smem %s0, 16, [#allocation2], [#allocation5]
    $region5: #{tpu_custom_call.1} parent=1 // pred_fallthru
      _
    // Predicated region
    $region6: #{tpu_custom_call.1} parent=1 // pred_check
      _
    $region7: #{tpu_custom_call.1} parent=1 // pred_check_branch
      %20 = sbr.rel (0) target = $region9
    $region8: #{tpu_custom_call.1} parent=1 // pred_region
      %s22 = ssub.s32 64, 64
      %23 = vsyncadd [#allocation3], %s22
      %s25 = sshll.u32 [#allocation6], 4
      %s26 = int_to_ptr.vmem [resolvable:$true] %s25
      %28 = dma.hbm_to_vmem [thread:$0]  %s1, 64, %s26, [#allocation3]
    $region9: #{tpu_custom_call.1} parent=1 // pred_fallthru
      _
    // Predicated region
    $region10: #{tpu_custom_call.1} parent=1 // pred_check
      _
    $region11: #{tpu_custom_call.1} parent=1 // pred_check_branch
      %30 = sbr.rel (0) target = $region13
    $region12: #{tpu_custom_call.1} parent=1 // pred_region
      _
    $region13: #{tpu_custom_call.1} parent=1 // pred_fallthru
      _
    // Predicated region
    $region14: #{tpu_custom_call.1} parent=1 // pred_check
      _
    $region15: #{tpu_custom_call.1} parent=1 // pred_check_branch
      %32 = sbr.rel (0) target = $region17
    $region16: #{tpu_custom_call.1} parent=1 // pred_region
      %33 = dma.done [#allocation5], 16
    $region17: #{tpu_custom_call.1} parent=1 // pred_fallthru
      _
    // Predicated region
    $region18: #{tpu_custom_call.1} parent=1 // pred_check
      _
    $region19: #{tpu_custom_call.1} parent=1 // pred_check_branch
      %35 = sbr.rel (0) target = $region21
    $region20: #{tpu_custom_call.1} parent=1 // pred_region
      %36 = dma.done [#allocation3], 64
    $region21: #{tpu_custom_call.1} parent=1 // pred_fallthru
      _
    %37 = sfence
    %s38 = sld [smem:[#allocation2]]
    %s39 = sld [smem:[#allocation2 + $0x1]]
    %v40 = vld [vmem:[%s2] sm:$0xf]
    %v41 = vstv %s38
    %v42 = vmul.f32 %v41, %v40
    %v43 = vld [vmem:[#allocation6] sm:$0xf]
    %v44 = vstv %s39
    %v45 = vmul.f32 %v44, %v43
    %v46 = vadd.f32 %v42, %v45
    %v47 = vlaneseq
    %vm48 = vcmp.ge.s32.totalorder %v47, 0
    %vm49 = vcmp.lt.s32.totalorder %v47, 512
    %vm50 = vmand %vm48, %vm49
    %51 = vst.msk [vmem:[#allocation7] sm:$0xf] %vm50, %v46
    // Predicated region
    $region22: #{tpu_custom_call.1} parent=1 // pred_check
      _
    $region23: #{tpu_custom_call.1} parent=1 // pred_check_branch
      %53 = sbr.rel (0) target = $region25
    $region24: #{tpu_custom_call.1} parent=1 // pred_region
      %s55 = ssub.s32 64, 64
      %56 = vsyncadd [#allocation4], %s55
      %s58 = sshll.u32 [#allocation7], 4
      %s59 = int_to_ptr.vmem [resolvable:$true] %s58
      %61 = dma.vmem_to_hbm [thread:$0]  %s59, 64, %s3, [#allocation4]
    $region25: #{tpu_custom_call.1} parent=1 // pred_fallthru
      _
    // Predicated region
    $region26: #{tpu_custom_call.1} parent=1 // pred_check
      _
    $region27: #{tpu_custom_call.1} parent=1 // pred_check_branch
      %63 = sbr.rel (0) target = $region29
    $region28: #{tpu_custom_call.1} parent=1 // pred_region
      %64 = dma.done [#allocation4], 64
    $region29: #{tpu_custom_call.1} parent=1 // pred_fallthru
      _
    %65 = vsyncpa [#allocation3], 1
    %66 = vsyncpa [#allocation4], 1
    %67 = vsyncpa [#allocation5], 1

</llo_original>
